<compile_context>
chip_gen: v5e
topology: v5e:2x2
jax: 0.10.0
libtpu: 0.0.40
codegen_flags: <defaults>
</compile_context>

<pallas_src>
import jax
import jax.numpy as jnp
from jax import lax
from jax.experimental import pallas as pl
from jax.experimental.pallas import tpu as pltpu


def rbm_forward_kernel(v_ref, w_ref, b_ref, u_ref, prob_ref, act_ref, acc_ref):
    """Computes one (tm, tn) output tile; grid axis 2 walks the Nin reduction."""
    k = pl.program_id(2)

    @pl.when(k == 0)
    def _():
        acc_ref[...] = jnp.zeros_like(acc_ref)

    # v tile (tm, tk) . W tile (tn, tk), contracting the shared Nin axis,
    # i.e. v @ W.T without ever materializing a transpose.  f32 accumulation.
    acc_ref[...] += lax.dot_general(
        v_ref[...], w_ref[...],
        dimension_numbers=(((1,), (1,)), ((), ())),
        preferred_element_type=jnp.float32)

    @pl.when(k == pl.num_programs(2) - 1)
    def _():
        logits = acc_ref[...] + b_ref[...]            # (tm, tn) + (1, tn)
        prob = jax.nn.sigmoid(logits)                 # EUP slot
        prob_ref[...] = prob.astype(prob_ref.dtype)
        # Bernoulli: act = 1{u < prob}, u ~ U[0,1). prob=0 never fires,
        # prob=1 always fires. Single VPU compare per element.
        act_ref[...] = (u_ref[...] < prob).astype(act_ref.dtype)


def _pick_tile(dim, max_tile, align):
    """Largest tile <= max_tile that divides `dim` and respects `align`,
    falling back to the full dimension (always a legal block shape)."""
    if dim <= max_tile:
        return dim
    t = (max_tile // align) * align
    while t >= align:
        if dim % t == 0:
            return t
        t -= align
    return dim


def rbm_forward(v, W, b, key, *, tm_max=256, tn_max=512, tk_max=512,
                compute_dtype=jnp.bfloat16, act_dtype=jnp.bfloat16):
    """Pallas implementation of RBM.forward.

    v:   (B, Nin)    float32 visible units
    W:   (Nout, Nin) float32 weights (PyTorch layout, NOT transposed)
    b:   (1, Nout)   float32 hidden bias
    key: jax PRNG key controlling the Bernoulli draw
    returns (prob, act): prob (B, Nout) f32, act (B, Nout) act_dtype (0/1)
    """
    B, Nin = v.shape
    Nout = W.shape[0]

    # Noise stream for the Bernoulli draw (deterministic given `key`).
    u = jax.random.uniform(key, (B, Nout), dtype=jnp.float32)

    v_c = v.astype(compute_dtype)
    w_c = W.astype(compute_dtype)          # stays in (Nout, Nin) layout
    b_c = b.astype(jnp.float32)

    tm = _pick_tile(B, tm_max, 8)
    tn = _pick_tile(Nout, tn_max, 128)
    tk = _pick_tile(Nin, tk_max, 128)
    grid = (B // tm, Nout // tn, Nin // tk)

    grid_spec = pltpu.PrefetchScalarGridSpec(
        num_scalar_prefetch=0,
        grid=grid,
        in_specs=[
            pl.BlockSpec((tm, tk), lambda i, j, k: (i, k)),   # v
            pl.BlockSpec((tn, tk), lambda i, j, k: (j, k)),   # W (torch layout)
            pl.BlockSpec((1, tn), lambda i, j, k: (0, j)),    # b
            pl.BlockSpec((tm, tn), lambda i, j, k: (i, j)),   # uniform noise
        ],
        out_specs=[
            pl.BlockSpec((tm, tn), lambda i, j, k: (i, j)),   # prob
            pl.BlockSpec((tm, tn), lambda i, j, k: (i, j)),   # act
        ],
        scratch_shapes=[pltpu.VMEM((tm, tn), jnp.float32)],   # f32 accumulator
    )

    prob, act = pl.pallas_call(
        rbm_forward_kernel,
        grid_spec=grid_spec,
        out_shape=(
            jax.ShapeDtypeStruct((B, Nout), jnp.float32),
            jax.ShapeDtypeStruct((B, Nout), act_dtype),
        ),
        compiler_params=pltpu.CompilerParams(
            dimension_semantics=("parallel", "parallel", "arbitrary")),
    )(v_c, w_c, b_c, u)
    return prob, act


if __name__ == "__main__":
    # Small shapes consistent with RBM(Nin, Nout): batch=8, Nin=256, Nout=128.
    # NOTE: at B=8 the MXU is occupancy-limited; batch Gibbs steps / calls
    # together at real scale so the M tile reaches >=128 (v5e) / >=256 (v6e+).
    B, Nin, Nout = 8, 256, 128

    key = jax.random.PRNGKey(0)
    k_w, k_v, k_bern = jax.random.split(key, 3)

    # __init__ with init_scheme='normal': W ~ N(0,1) * 0.01, b zeros
    scale_factor = 0.01
    W = jax.random.normal(k_w, (Nout, Nin), dtype=jnp.float32) * scale_factor
    b = jnp.zeros((1, Nout), dtype=jnp.float32)

    # visible units in [0,1] as an RBM would see
    v = jax.random.uniform(k_v, (B, Nin), dtype=jnp.float32)

    prob, act = rbm_forward(v, W, b, k_bern)
    jax.block_until_ready((prob, act))

    # reference: same bf16-streamed matmul with f32 accumulation
    prob_ref = jax.nn.sigmoid(
        jnp.dot(v.astype(jnp.bfloat16), W.astype(jnp.bfloat16).T,
                preferred_element_type=jnp.float32) + b)
    u = jax.random.uniform(k_bern, (B, Nout), dtype=jnp.float32)

    assert prob.shape == (B, Nout) and act.shape == (B, Nout)
    assert jnp.allclose(prob, prob_ref, atol=1e-4)
    assert bool(jnp.all((act == 0.0) | (act == 1.0)))
    # sampling decision matches u < prob exactly
    assert bool(jnp.all(act.astype(jnp.float32) ==
                        (u < prob).astype(jnp.float32)))

    print("KERNEL_OK")
</pallas_src>

<mosaic_0001>
module attributes {stable_mosaic.version = 11 : i64} {
  func.func @rbm_forward_kernel(%arg0: i32, %arg1: i32, %arg2: i32, %arg3: memref<8x256xbf16, #tpu.memory_space<vmem>>, %arg4: memref<128x256xbf16, #tpu.memory_space<vmem>>, %arg5: memref<1x128xf32, #tpu.memory_space<vmem>>, %arg6: memref<8x128xf32, #tpu.memory_space<vmem>>, %arg7: memref<8x128xf32, #tpu.memory_space<vmem>>, %arg8: memref<8x128xbf16, #tpu.memory_space<vmem>>, %arg9: memref<8x128xf32, #tpu.memory_space<vmem>>) attributes {dimension_semantics = [#tpu.dimension_semantics<parallel>, #tpu.dimension_semantics<parallel>, #tpu.dimension_semantics<arbitrary>], iteration_bounds = array<i64: 1, 1, 1>, scalar_prefetch = 0 : i64, scratch_operands = 1 : i64, tpu.core_type = #tpu.core_type<tc>, window_params = [{transform_indices = @transform_0, window_bounds = array<i64: 8, 256>}, {transform_indices = @transform_1, window_bounds = array<i64: 128, 256>}, {transform_indices = @transform_2, window_bounds = array<i64: 1, 128>}, {transform_indices = @transform_3, window_bounds = array<i64: 8, 128>}, {transform_indices = @transform_4, window_bounds = array<i64: 8, 128>}, {transform_indices = @transform_5, window_bounds = array<i64: 8, 128>}]} {
    %c0_i32 = arith.constant 0 : i32
    %0 = arith.cmpi eq, %arg2, %c0_i32 : i32
    %1 = arith.extui %0 : i1 to i32
    %c0_i32_0 = arith.constant 0 : i32
    %2 = arith.cmpi ne, %1, %c0_i32_0 : i32
    scf.if %2 {
      %cst_10 = arith.constant 0.000000e+00 : f32
      %12 = vector.broadcast %cst_10 : f32 to vector<8x128xf32>
      %c0_11 = arith.constant 0 : index
      %c0_12 = arith.constant 0 : index
      %13 = vector.load %arg9[%c0_11, %c0_12] : memref<8x128xf32, #tpu.memory_space<vmem>>, vector<8x128xf32>
      tpu.vector_store %arg9[%c0_11, %c0_12], %12 {strides = array<i32>} : memref<8x128xf32, #tpu.memory_space<vmem>>, vector<8x128xf32>,
    } else {
    }
    %c0 = arith.constant 0 : index
    %c0_1 = arith.constant 0 : index
    %3 = vector.load %arg9[%c0, %c0_1] : memref<8x128xf32, #tpu.memory_space<vmem>>, vector<8x128xf32>
    %c0_2 = arith.constant 0 : index
    %c0_3 = arith.constant 0 : index
    %4 = vector.load %arg3[%c0_2, %c0_3] : memref<8x256xbf16, #tpu.memory_space<vmem>>, vector<8x256xbf16>
    %c0_4 = arith.constant 0 : index
    %c0_5 = arith.constant 0 : index
    %5 = vector.load %arg4[%c0_4, %c0_5] : memref<128x256xbf16, #tpu.memory_space<vmem>>, vector<128x256xbf16>
    %cst = arith.constant dense<0.000000e+00> : vector<8x128xf32>
    %6 = tpu.matmul %4, %5, %cst {dimension_numbers = #tpu.dot_dimension_numbers<[1], [1], [0], [0], [0, 0, 1, 0], [], []>} : vector<8x256xbf16>, vector<128x256xbf16>, vector<8x128xf32> -> vector<8x128xf32>
    %7 = arith.addf %3, %6 : vector<8x128xf32>
    %c0_6 = arith.constant 0 : index
    %c0_7 = arith.constant 0 : index
    %8 = vector.load %arg9[%c0_6, %c0_7] : memref<8x128xf32, #tpu.memory_space<vmem>>, vector<8x128xf32>
    tpu.vector_store %arg9[%c0_6, %c0_7], %7 {strides = array<i32>} : memref<8x128xf32, #tpu.memory_space<vmem>>, vector<8x128xf32>,
    %c0_i32_8 = arith.constant 0 : i32
    %9 = arith.cmpi eq, %arg2, %c0_i32_8 : i32
    %10 = arith.extui %9 : i1 to i32
    %c0_i32_9 = arith.constant 0 : i32
    %11 = arith.cmpi ne, %10, %c0_i32_9 : i32
    scf.if %11 {
      %c0_10 = arith.constant 0 : index
      %c0_11 = arith.constant 0 : index
      %12 = vector.load %arg9[%c0_10, %c0_11] : memref<8x128xf32, #tpu.memory_space<vmem>>, vector<8x128xf32>
      %c0_12 = arith.constant 0 : index
      %c0_13 = arith.constant 0 : index
      %13 = vector.load %arg5[%c0_12, %c0_13] : memref<1x128xf32, #tpu.memory_space<vmem>>, vector<1x128xf32>
      %14 = vector.broadcast %13 : vector<1x128xf32> to vector<8x128xf32>
      %15 = arith.addf %12, %14 : vector<8x128xf32>
      %16 = arith.negf %15 : vector<8x128xf32>
      %17 = math.exp %16 : vector<8x128xf32>
      %cst_14 = arith.constant 1.000000e+00 : f32
      %18 = vector.broadcast %cst_14 : f32 to vector<8x128xf32>
      %19 = arith.addf %18, %17 : vector<8x128xf32>
      %20 = arith.divf %18, %19 : vector<8x128xf32>
      %c0_15 = arith.constant 0 : index
      %c0_16 = arith.constant 0 : index
      %21 = vector.load %arg7[%c0_15, %c0_16] : memref<8x128xf32, #tpu.memory_space<vmem>>, vector<8x128xf32>
      tpu.vector_store %arg7[%c0_15, %c0_16], %20 {strides = array<i32>} : memref<8x128xf32, #tpu.memory_space<vmem>>, vector<8x128xf32>,
      %c0_17 = arith.constant 0 : index
      %c0_18 = arith.constant 0 : index
      %22 = vector.load %arg6[%c0_17, %c0_18] : memref<8x128xf32, #tpu.memory_space<vmem>>, vector<8x128xf32>
      %23 = arith.cmpf olt, %22, %20 : vector<8x128xf32>
      %24 = arith.extui %23 : vector<8x128xi1> to vector<8x128xi32>
      %25 = arith.sitofp %24 : vector<8x128xi32> to vector<8x128xf32>
      %26 = arith.truncf %25 : vector<8x128xf32> to vector<8x128xbf16>
      %c0_19 = arith.constant 0 : index
      %c0_20 = arith.constant 0 : index
      %27 = vector.load %arg8[%c0_19, %c0_20] : memref<8x128xbf16, #tpu.memory_space<vmem>>, vector<8x128xbf16>
      tpu.vector_store %arg8[%c0_19, %c0_20], %26 {strides = array<i32>} : memref<8x128xbf16, #tpu.memory_space<vmem>>, vector<8x128xbf16>,
    } else {
    }
    return
  }
  func.func @transform_0(%arg0: i32, %arg1: i32, %arg2: i32) -> (i32, i32) {
    %c0_i32 = arith.constant 0 : i32
    return %arg0, %arg2 : i32, i32
  }
  func.func @transform_1(%arg0: i32, %arg1: i32, %arg2: i32) -> (i32, i32) {
    %c0_i32 = arith.constant 0 : i32
    return %arg1, %arg2 : i32, i32
  }
  func.func @transform_2(%arg0: i32, %arg1: i32, %arg2: i32) -> (i32, i32) {
    %c0_i32 = arith.constant 0 : i32
    %c0_i32_0 = arith.constant 0 : i32
    return %c0_i32, %arg1 : i32, i32
  }
  func.func @transform_3(%arg0: i32, %arg1: i32, %arg2: i32) -> (i32, i32) {
    %c0_i32 = arith.constant 0 : i32
    return %arg0, %arg1 : i32, i32
  }
  func.func @transform_4(%arg0: i32, %arg1: i32, %arg2: i32) -> (i32, i32) {
    %c0_i32 = arith.constant 0 : i32
    return %arg0, %arg1 : i32, i32
  }
  func.func @transform_5(%arg0: i32, %arg1: i32, %arg2: i32) -> (i32, i32) {
    %c0_i32 = arith.constant 0 : i32
    return %arg0, %arg1 : i32, i32
  }
}

</mosaic_0001>

<llo_original>
// kernel: tpu_custom_call.1
$region0: #{tpu_custom_call.1}
  #allocation0 [shape = 'u32[]', space=smem, size = 0x4, offset = 0x4, fixed_abs, tag = 'smem constant byte address 0x4 - core index']
  #allocation1 [shape = 'u32[72,128]{1,0:T(1,128)}', space=vmem, size = 0x9000, scoped, tag = 'internal scratch']
  #allocation2 [shape = 'f32[8,128]{1,0:T(8,128)}', space=vmem, size = 0x1000, scoped, tag = 'scratch operand']
  %s0 = inlined_call_operand.hbm [shape: bf16[8,256], index: 0, kind: input, shape index: {}]
  %s1 = inlined_call_operand.hbm [shape: bf16[128,256], index: 1, kind: input, shape index: {}]
  %s2 = inlined_call_operand.vmem [shape: f32[1,128], index: 2, kind: input, shape index: {}]
  %s3 = inlined_call_operand.hbm [shape: f32[8,128], index: 3, kind: input, shape index: {}]
  %s4 = inlined_call_operand.hbm [shape: f32[8,128], index: 4, kind: output, shape index: {0}]
  %s5 = inlined_call_operand.hbm [shape: bf16[8,128], index: 5, kind: output, shape index: {1}]
  %6 = xla_tuple %s4, %s5
  %s7 = sld [smem:[#allocation0]]
  $region54: #{tpu_custom_call.1} parent=0
    _
  %s9 = ssub.s32 1, %s7
  %s10 = scalar_select 0, %s9, %s7
  $region1: #{tpu_custom_call.1} parent=0
    #allocation3 [shape = 'u8[4096]{0}', space=vmem, size = 0x1000, scoped, tag = 'input window, operand 0, single buffered']
    #allocation4 [shape = 's32[1]{0}', space=sflag, size = 0x4, scoped, tag = 'scoped memory for tpu_custom_call.1']
    #allocation5 [shape = 's32[1]{0}', space=sflag, size = 0x4, scoped, tag = 'scoped memory for tpu_custom_call.1']
    #allocation6 [shape = 'u8[65536]{0}', space=vmem, size = 0x10000, scoped, tag = 'input window, operand 1, single buffered']
    #allocation7 [shape = 's32[1]{0}', space=sflag, size = 0x4, scoped, tag = 'scoped memory for tpu_custom_call.1']
    #allocation8 [shape = 'u8[4096]{0}', space=vmem, size = 0x1000, scoped, tag = 'input window, operand 3, single buffered']
    #allocation9 [shape = 'u8[4096]{0}', space=vmem, size = 0x1000, scoped, tag = 'output window, operand 0, single buffered']
    #allocation10 [shape = 'u8[2048]{0}', space=vmem, size = 0x800, scoped, tag = 'output window, operand 1, single buffered']
    #allocation11 [shape = 's32[1]{0}', space=sflag, size = 0x4, scoped, tag = 'scoped memory for tpu_custom_call.1']
    %11 = vsyncpa [#allocation4], 0
    %12 = vsyncpa [#allocation7], 0
    %13 = vsyncpa [#allocation5], 0
    %14 = vsyncpa [#allocation11], 0
    // Predicated region
    $region2: #{tpu_custom_call.1} parent=1 // pred_check
      _
    $region3: #{tpu_custom_call.1} parent=1 // pred_check_branch
      %16 = sbr.rel (0) target = $region5
    $region4: #{tpu_custom_call.1} parent=1 // pred_region
      %18 = vsyncadd [#allocation4], 0
      %s20 = sshll.u32 %s0, 4
      %s21 = int_to_ptr.hbm [resolvable:$true] %s20
      %s22 = sshll.u32 [#allocation3], 4
      %s23 = int_to_ptr.vmem [resolvable:$true] %s22
      %25 = dma.hbm_to_vmem [thread:$0]  %s21, 128, %s23, [#allocation4]
    $region5: #{tpu_custom_call.1} parent=1 // pred_fallthru
      _
    // Predicated region
    $region6: #{tpu_custom_call.1} parent=1 // pred_check
      _
    $region7: #{tpu_custom_call.1} parent=1 // pred_check_branch
      %27 = sbr.rel (0) target = $region9
    $region8: #{tpu_custom_call.1} parent=1 // pred_region
      %29 = vsyncadd [#allocation7], 0
      %s30 = sshll.u32 %s1, 4
      %s31 = int_to_ptr.hbm [resolvable:$true] %s30
      %s32 = sshll.u32 [#allocation6], 4
      %s33 = int_to_ptr.vmem [resolvable:$true] %s32
      %38 = dma.hbm_to_vmem [thread:$0]  %s31, 2048, %s33, [#allocation7], 128, 128, 8
    $region9: #{tpu_custom_call.1} parent=1 // pred_fallthru
      _
    // Predicated region
    $region10: #{tpu_custom_call.1} parent=1 // pred_check
      _
    $region11: #{tpu_custom_call.1} parent=1 // pred_check_branch
      %40 = sbr.rel (0) target = $region13
    $region12: #{tpu_custom_call.1} parent=1 // pred_region
      _
    $region13: #{tpu_custom_call.1} parent=1 // pred_fallthru
      _
    // Predicated region
    $region14: #{tpu_custom_call.1} parent=1 // pred_check
      _
    $region15: #{tpu_custom_call.1} parent=1 // pred_check_branch
      %42 = sbr.rel (0) target = $region17
    $region16: #{tpu_custom_call.1} parent=1 // pred_region
      %44 = vsyncadd [#allocation7], 0
      %s46 = sshll.u32 %s3, 4
      %s47 = int_to_ptr.hbm [resolvable:$true] %s46
      %s48 = sshll.u32 [#allocation8], 4
      %s49 = int_to_ptr.vmem [resolvable:$true] %s48
      %51 = dma.hbm_to_vmem [thread:$0]  %s47, 128, %s49, [#allocation7]
    $region17: #{tpu_custom_call.1} parent=1 // pred_fallthru
      _
    // Predicated region
    $region18: #{tpu_custom_call.1} parent=1 // pred_check
      _
    $region19: #{tpu_custom_call.1} parent=1 // pred_check_branch
      %53 = sbr.rel (0) target = $region21
    $region20: #{tpu_custom_call.1} parent=1 // pred_region
      %55 = dma.done [#allocation4], 128
    $region21: #{tpu_custom_call.1} parent=1 // pred_fallthru
      _
    // Predicated region
    $region22: #{tpu_custom_call.1} parent=1 // pred_check
      _
    $region23: #{tpu_custom_call.1} parent=1 // pred_check_branch
      %57 = sbr.rel (0) target = $region25
    $region24: #{tpu_custom_call.1} parent=1 // pred_region
      %59 = dma.done [#allocation7], 2048
    $region25: #{tpu_custom_call.1} parent=1 // pred_fallthru
      _
    // Predicated region
    $region26: #{tpu_custom_call.1} parent=1 // pred_check
      _
    $region27: #{tpu_custom_call.1} parent=1 // pred_check_branch
      %61 = sbr.rel (0) target = $region29
    $region28: #{tpu_custom_call.1} parent=1 // pred_region
      %63 = dma.done [#allocation7], 128
    $region29: #{tpu_custom_call.1} parent=1 // pred_fallthru
      _
    %p64 = scmp.eq.s32.totalorder 0, 0
    // Predicated region
    $region30: #{tpu_custom_call.1} parent=1 // pred_check
      %p65 = pneg %p64
    $region31: #{tpu_custom_call.1} parent=1 // pred_check_branch
      %67 = sbr.rel (%p65) target = $region33
    $region32: #{tpu_custom_call.1} parent=1 // pred_region
      %68 = vst [vmem:[#allocation2] sm:$0xff] 0.0
    $region33: #{tpu_custom_call.1} parent=1 // pred_fallthru
      _
    %v69 = vld [vmem:[#allocation2] sm:$0xff]
    %v70 = vld [vmem:[#allocation3] sm:$0xff]
    %v71 = vld [vmem:[#allocation6] sm:$0xff]
    %v72 = vld [vmem:[#allocation6 + $0x8] sm:$0xff]
    %v73 = vld [vmem:[#allocation6 + $0x10] sm:$0xff]
    %v74 = vld [vmem:[#allocation6 + $0x18] sm:$0xff]
    %v75 = vld [vmem:[#allocation6 + $0x20] sm:$0xff]
    %v76 = vld [vmem:[#allocation6 + $0x28] sm:$0xff]
    %v77 = vld [vmem:[#allocation6 + $0x30] sm:$0xff]
    %v78 = vld [vmem:[#allocation6 + $0x38] sm:$0xff]
    %v79 = vld [vmem:[#allocation6 + $0x40] sm:$0xff]
    %v80 = vld [vmem:[#allocation6 + $0x48] sm:$0xff]
    %v81 = vld [vmem:[#allocation6 + $0x50] sm:$0xff]
    %v82 = vld [vmem:[#allocation6 + $0x58] sm:$0xff]
    %v83 = vld [vmem:[#allocation6 + $0x60] sm:$0xff]
    %v84 = vld [vmem:[#allocation6 + $0x68] sm:$0xff]
    %v85 = vld [vmem:[#allocation6 + $0x70] sm:$0xff]
    %v86 = vld [vmem:[#allocation6 + $0x78] sm:$0xff]
    %v88 = vunpack.c.l.b16 %v70
    %v89 = vunpack.c.h.b16 %v70
    %v90 = vpack.c.b16 %v88, %v88
    %v91 = vpack.c.b16 %v89, %v89
    %v110 = vunpack.c.l.b16 %v71
    %v111 = vunpack.c.h.b16 %v71
    %v112 = vunpack.c.l.b16 %v72
    %v113 = vunpack.c.h.b16 %v72
    %v114 = vunpack.c.l.b16 %v73
    %v115 = vunpack.c.h.b16 %v73
    %v116 = vunpack.c.l.b16 %v74
    %v117 = vunpack.c.h.b16 %v74
    %v118 = vunpack.c.l.b16 %v75
    %v119 = vunpack.c.h.b16 %v75
    %v120 = vunpack.c.l.b16 %v76
    %v121 = vunpack.c.h.b16 %v76
    %v122 = vunpack.c.l.b16 %v77
    %v123 = vunpack.c.h.b16 %v77
    %v124 = vunpack.c.l.b16 %v78
    %v125 = vunpack.c.h.b16 %v78
    %v126 = vunpack.c.l.b16 %v79
    %v127 = vunpack.c.h.b16 %v79
    %v128 = vunpack.c.l.b16 %v80
    %v129 = vunpack.c.h.b16 %v80
    %v130 = vunpack.c.l.b16 %v81
    %v131 = vunpack.c.h.b16 %v81
    %v132 = vunpack.c.l.b16 %v82
    %v133 = vunpack.c.h.b16 %v82
    %v134 = vunpack.c.l.b16 %v83
    %v135 = vunpack.c.h.b16 %v83
    %v136 = vunpack.c.l.b16 %v84
    %v137 = vunpack.c.h.b16 %v84
    %v138 = vunpack.c.l.b16 %v85
    %v139 = vunpack.c.h.b16 %v85
    %v140 = vunpack.c.l.b16 %v86
    %v141 = vunpack.c.h.b16 %v86
    %v142 = vpack.c.b16 %v112, %v110
    %v143 = vpack.c.b16 %v113, %v111
    %v144 = vpack.c.b16 %v116, %v114
    %v145 = vpack.c.b16 %v117, %v115
    %v146 = vpack.c.b16 %v120, %v118
    %v147 = vpack.c.b16 %v121, %v119
    %v148 = vpack.c.b16 %v124, %v122
    %v149 = vpack.c.b16 %v125, %v123
    %v150 = vpack.c.b16 %v128, %v126
    %v151 = vpack.c.b16 %v129, %v127
    %v152 = vpack.c.b16 %v132, %v130
    %v153 = vpack.c.b16 %v133, %v131
    %v154 = vpack.c.b16 %v136, %v134
    %v155 = vpack.c.b16 %v137, %v135
    %v156 = vpack.c.b16 %v140, %v138
    %v157 = vpack.c.b16 %v141, %v139
    %174 = vmatpush.bf16.xpose.msra.mxu0 %v156
    %175 = vmatpush.bf16.xpose.msra.mxu0 %v154
    %176 = vmatpush.bf16.xpose.msra.mxu0 %v152
    %177 = vmatpush.bf16.xpose.msra.mxu0 %v150
    %178 = vmatpush.bf16.xpose.msra.mxu0 %v148
    %179 = vmatpush.bf16.xpose.msra.mxu0 %v146
    %180 = vmatpush.bf16.xpose.msra.mxu0 %v144
    %181 = vmatpush.bf16.xpose.msra.mxu0 %v142
    %182 = vmatmul.bf16.gmra.mxu0 %v90
    %v183 = vpop.f32.mrf.mxu0
    %v184 = vadd.f32 0.0, %v183
    %v185 = vpop.f32.mrf.mxu0
    %186 = vdwg.mxu0
    %187 = vmatpush.bf16.xpose.msra.mxu0 %v157
    %188 = vmatpush.bf16.xpose.msra.mxu0 %v155
    %189 = vmatpush.bf16.xpose.msra.mxu0 %v153
    %190 = vmatpush.bf16.xpose.msra.mxu0 %v151
    %191 = vmatpush.bf16.xpose.msra.mxu0 %v149
    %192 = vmatpush.bf16.xpose.msra.mxu0 %v147
    %193 = vmatpush.bf16.xpose.msra.mxu0 %v145
    %194 = vmatpush.bf16.xpose.msra.mxu0 %v143
    %195 = vmatmul.bf16.gmra.mxu0 %v91
    %v196 = vpop.f32.mrf.mxu0
    %v197 = vadd.f32 %v184, %v196
    %v198 = vpop.f32.mrf.mxu0
    %199 = vdwg.mxu0
    %v200 = vadd.f32 %v69, %v197
    %201 = vst [vmem:[#allocation2] sm:$0xff] %v200
    // Predicated region
    $region34: #{tpu_custom_call.1} parent=1 // pred_check
      %p202 = pneg %p64
    $region35: #{tpu_custom_call.1} parent=1 // pred_check_branch
      %204 = sbr.rel (%p202) target = $region37
    $region36: #{tpu_custom_call.1} parent=1 // pred_region
      %v205 = vld [vmem:[#allocation2] sm:$0xff]
      %v206 = vld [vmem:[%s2] sm:$0x1]
      %v208 = vperm.slane %v206, 0
      %v210 = vadd.f32 %v205, %v208
      %v211 = vxor.u32 %v210, 2147483648
      %v212 = vmul.f32 %v211, 1.442695
      %v213 = vpow.pop %v212
      %v214 = vadd.f32 %v213, 1.0
      %v215 = vrcp.pop %v214
      %v216 = vmul.f32 %v214, %v215
      %v217 = vsub.f32 1.0, %v216
      %v218 = vmul.f32 %v215, %v217
      %v219 = vadd.f32 %v215, %v218
      %vm220 = vweird.f32 %v214
      %vm221 = vweird.f32 %v215
      %vm222 = vmor %vm220, %vm221
      %v223 = vsel %vm222, %v215, %v219
      %v224 = vand.u32 2147483647, %v214
      %vm225 = vcmp.eq.f32.partialorder %v224, 8.507059e+37
      %v226 = vand.u32 %v214, 2147483648
      %v227 = vor.u32 1.1754944e-38, %v226
      %v228 = vsel %vm225, %v227, %v223
      %v229 = vmul.f32 1.0, %v228
      %230 = vst [vmem:[#allocation9] sm:$0xff] %v229
      %v231 = vld [vmem:[#allocation8] sm:$0xff]
      %vm232 = vcmp.lt.f32.partialorder %v231, %v229
      %v233 = vsel %vm232, 1, 0
      %v234 = vcvt.s32.f32 %v233
      %v235 = vpack.c.bf16 %v234, %v234
      %236 = vst [vmem:[#allocation10] sm:$0xf] %v235
    $region37: #{tpu_custom_call.1} parent=1 // pred_fallthru
      _
    // Predicated region
    $region38: #{tpu_custom_call.1} parent=1 // pred_check
      _
    $region39: #{tpu_custom_call.1} parent=1 // pred_check_branch
      %238 = sbr.rel (0) target = $region41
    $region40: #{tpu_custom_call.1} parent=1 // pred_region
      %240 = vsyncadd [#allocation5], 0
      %s242 = sshll.u32 [#allocation9], 4
      %s243 = int_to_ptr.vmem [resolvable:$true] %s242
      %s244 = sshll.u32 %s4, 4
      %s245 = int_to_ptr.hbm [resolvable:$true] %s244
      %247 = dma.vmem_to_hbm [thread:$0]  %s243, 128, %s245, [#allocation5]
    $region41: #{tpu_custom_call.1} parent=1 // pred_fallthru
      _
    // Predicated region
    $region42: #{tpu_custom_call.1} parent=1 // pred_check
      _
    $region43: #{tpu_custom_call.1} parent=1 // pred_check_branch
      %249 = sbr.rel (0) target = $region45
    $region44: #{tpu_custom_call.1} parent=1 // pred_region
      %251 = vsyncadd [#allocation11], 0
      %s253 = sshll.u32 [#allocation10], 4
      %s254 = int_to_ptr.vmem [resolvable:$true] %s253
      %s255 = sshll.u32 %s5, 4
      %s256 = int_to_ptr.hbm [resolvable:$true] %s255
      %258 = dma.vmem_to_hbm [thread:$0]  %s254, 64, %s256, [#allocation11]
    $region45: #{tpu_custom_call.1} parent=1 // pred_fallthru
      _
    // Predicated region
    $region46: #{tpu_custom_call.1} parent=1 // pred_check
      _
    $region47: #{tpu_custom_call.1} parent=1 // pred_check_branch
      %260 = sbr.rel (0) target = $region49
    $region48: #{tpu_custom_call.1} parent=1 // pred_region
      %262 = dma.done [#allocation5], 128
    $region49: #{tpu_custom_call.1} parent=1 // pred_fallthru
      _
    // Predicated region
    $region50: #{tpu_custom_call.1} parent=1 // pred_check
      _
    $region51: #{tpu_custom_call.1} parent=1 // pred_check_branch
      %264 = sbr.rel (0) target = $region53
    $region52: #{tpu_custom_call.1} parent=1 // pred_region
      %266 = dma.done [#allocation11], 64
    $region53: #{tpu_custom_call.1} parent=1 // pred_fallthru
      _
    %267 = vsyncpa [#allocation4], 1
    %268 = vsyncpa [#allocation7], 1
    %269 = vsyncpa [#allocation5], 1
    %270 = vsyncpa [#allocation11], 1

</llo_original>
